<compile_context>
chip_gen: v7x
topology: tpu7x:2x2x1
jax: 0.10.0
libtpu: 0.0.40
codegen_flags: <defaults>
</compile_context>

<pallas_src>
import functools

import jax
import jax.numpy as jnp
from jax.experimental import pallas as pl
from jax.experimental.pallas import tpu as pltpu


def _quantize_kernel(xp_ref, e_bd_neg2_ref, e_bd_t_ref, e_sq_ref,
                     q_ref, ind_ref, sse_ref, *, groups, n_embed):
    xp = xp_ref[...]                       # (TN4, G*D) f32, lane-dense packed x
    e_bd_neg2 = e_bd_neg2_ref[...]         # (G*D, G*K) block-diagonal -2*E
    e_bd_t = e_bd_t_ref[...]               # (G*K, G*D) block-diagonal E^T
    e_sq = e_sq_ref[...]                   # (1, G*K)   tiled ||e||^2

    tn4, gd = xp.shape
    k = n_embed

    # Selection term.  -2 is pre-folded into the codebook and the per-row
    # ||x||^2 constant is dropped: neither changes the per-group argmin.
    # One 128-deep MXU contraction scores `groups` original rows at once.
    dist = jnp.dot(xp, e_bd_neg2, preferred_element_type=jnp.float32) + e_sq   # (TN4, G*K)

    # Per-group (per original row) argmin + one-hot, built from static
    # 128-lane slices / concats (vreg selection only, no relayout).
    iota_k = jax.lax.broadcasted_iota(jnp.int32, (tn4, k), 1)
    ind_rows = []
    onehot_parts = []
    for g in range(groups):
        dg = dist[:, g * k:(g + 1) * k]                       # (TN4, K)
        idx = jnp.argmin(dg, axis=1).astype(jnp.int32)        # (TN4,)
        ind_rows.append(idx[None, :])
        onehot_parts.append((idx[:, None] == iota_k).astype(jnp.float32))

    ind_ref[...] = (jnp.concatenate(ind_rows, axis=0)
                    if groups > 1 else ind_rows[0])            # (G, TN4)

    onehot = (jnp.concatenate(onehot_parts, axis=1)
              if groups > 1 else onehot_parts[0])              # (TN4, G*K)

    # Gather codebook rows via one-hot matmul against block-diagonal E^T; the
    # result is already in the packed lane-dense layout.
    q = jnp.dot(onehot, e_bd_t, preferred_element_type=jnp.float32)            # (TN4, G*D)
    q_ref[...] = q.astype(q_ref.dtype)

    # Per-tile partial SSE as an (8, G*D) vreg-shaped slab (pure VPU adds);
    # wrapper does the single final reduce.
    err = q - xp
    err2 = err * err
    sse_ref[...] = jnp.sum(err2.reshape(tn4 // 8, 8, gd), axis=0)[None]


def _pick_tile_rows(n_rows, want_rows, groups):
    """Largest per-step original-row count <= want_rows that divides n_rows,
    keeps packed sublanes a multiple of 8, and (when tiling) keeps the
    lane-dense index output a multiple of 128 lanes."""
    want = min(want_rows, n_rows)
    if want >= n_rows:
        return n_rows
    lane_step = 128 * groups     # tn4 % 128 == 0 -> unmasked index stores
    base_step = 8 * groups       # tn4 % 8 == 0   -> sublane-aligned blocks
    for step in (lane_step, base_step):
        if step > want:
            continue
        t = (want // step) * step
        while t >= step:
            if n_rows % t == 0:
                return t
            t -= step
    return n_rows


@functools.partial(jax.jit, static_argnames=("tile_rows",))
def quantize_forward(x, embed, tile_rows=4096):
    """x: (B, H, W, dim) float32, embed: (dim, n_embed) float32.

    Returns (quantize, diff, embed_ind) with the same semantics as
    Quantize.forward in eval mode.  Eval-only: no VJP through `diff`.
    """
    B, H, W, D = x.shape
    K = embed.shape[1]
    N = B * H * W

    # Rows-per-128-lanes packing factor (block-diagonal codebook).
    G = 128 // D if (D <= 128 and 128 % D == 0) else 1
    if N % G != 0:
        G = 1

    flat = x.reshape(N, D).astype(jnp.float32)
    embed_f = embed.astype(jnp.float32)

    # --- grid-invariant codebook precompute (hoisted out of the kernel) -----
    eye_g = jnp.eye(G, dtype=jnp.float32)
    # Block-diagonal "-2 E" for the distance matmul: (G*D, G*K).
    e_bd_neg2 = jnp.einsum("gh,dk->gdhk", eye_g, -2.0 * embed_f).reshape(G * D, G * K)
    # Block-diagonal E^T for the one-hot gather matmul: (G*K, G*D).
    e_bd_t = jnp.einsum("gh,kd->gkhd", eye_g, embed_f.T).reshape(G * K, G * D)
    # ||e||^2 tiled once per group: (1, G*K).
    e_sq = jnp.tile(jnp.sum(embed_f * embed_f, axis=0, keepdims=True), (1, G))

    # Packed x: G consecutive rows per packed row (lane-dense 128-wide rows).
    xp = flat.reshape(N // G, G * D)

    tile_n = _pick_tile_rows(N, tile_rows, G)        # original rows per step
    tn4 = tile_n // G                                # packed rows per step
    n_tiles = N // tile_n
    assert N % tile_n == 0
    assert tn4 % 8 == 0, "packed rows per tile must be a multiple of 8 sublanes"

    cost = pl.CostEstimate(
        flops=4 * (N // G) * (G * D) * (G * K),      # two packed matmuls / tile
        transcendentals=0,
        bytes_accessed=(2 * N * D + N + 2 * (G * D) * (G * K) + G * K
                        + n_tiles * 8 * G * D) * 4,
    )

    q_p, ind_out, sse_part = pl.pallas_call(
        functools.partial(_quantize_kernel, groups=G, n_embed=K),
        out_shape=(
            jax.ShapeDtypeStruct((N // G, G * D), jnp.float32),
            jax.ShapeDtypeStruct((G, N // G), jnp.int32),
            jax.ShapeDtypeStruct((n_tiles, 8, G * D), jnp.float32),
        ),
        grid_spec=pltpu.PrefetchScalarGridSpec(
            num_scalar_prefetch=0,
            grid=(n_tiles,),
            in_specs=[
                pl.BlockSpec((tn4, G * D), lambda i: (i, 0)),
                # Constant index_map => codebook stays resident, no per-step DMA.
                pl.BlockSpec((G * D, G * K), lambda i: (0, 0)),
                pl.BlockSpec((G * K, G * D), lambda i: (0, 0)),
                pl.BlockSpec((1, G * K), lambda i: (0, 0)),
            ],
            out_specs=[
                pl.BlockSpec((tn4, G * D), lambda i: (i, 0)),
                pl.BlockSpec((G, tn4), lambda i: (0, i)),
                pl.BlockSpec((1, 8, G * D), lambda i: (i, 0, 0)),
            ],
        ),
        compiler_params=pltpu.CompilerParams(
            # Independent tiles (no cross-step accumulator) -> megacore-shardable.
            dimension_semantics=("parallel",),
            # Explicit scoped-VMEM budget with headroom (v5e default is 16 MiB).
            vmem_limit_bytes=32 * 1024 * 1024,
        ),
        cost_estimate=cost,
    )(xp, e_bd_neg2, e_bd_t, e_sq)

    quantize = q_p.reshape(B, H, W, D)
    # ind_out[g, i] is the code index of original row i*G + g.
    embed_ind = jnp.transpose(ind_out).reshape(B, H, W)
    diff = jnp.sum(sse_part) / jnp.float32(N * D)

    # Straight-through estimator: quantize = x + stop_grad(quantize - x).
    quantize = x + jax.lax.stop_gradient(quantize - x)
    return quantize, diff, embed_ind


def _reference_forward(x, embed):
    """Pure-JAX reference mirroring the PyTorch forward (eval mode)."""
    B, H, W, D = x.shape
    flat = x.reshape(-1, D)
    dist = (
        jnp.sum(flat**2, axis=1, keepdims=True)
        - 2.0 * flat @ embed
        + jnp.sum(embed**2, axis=0, keepdims=True)
    )
    ind = jnp.argmin(dist, axis=1)
    quantize = embed.T[ind].reshape(B, H, W, D)
    diff = jnp.mean((quantize - x) ** 2)
    return quantize, diff, ind.reshape(B, H, W)


if __name__ == "__main__":
    dim = 32       # embedding dim
    n_embed = 128  # codebook size
    B, Hs, Ws = 2, 8, 8

    key = jax.random.PRNGKey(0)
    k_x, k_e = jax.random.split(key)
    x = jax.random.normal(k_x, (B, Hs, Ws, dim), dtype=jnp.float32)
    embed = jax.random.normal(k_e, (dim, n_embed), dtype=jnp.float32)

    quantize, diff, embed_ind = quantize_forward(x, embed)
    jax.block_until_ready((quantize, diff, embed_ind))

    # Lightweight self-check against a pure-JAX reference.
    q_ref, d_ref, i_ref = _reference_forward(x, embed)
    assert jnp.array_equal(embed_ind, i_ref)
    assert jnp.allclose(quantize, q_ref, atol=1e-5, rtol=1e-5)
    assert jnp.allclose(diff, d_ref, atol=1e-5, rtol=1e-5)

    print("KERNEL_OK")
</pallas_src>

<mosaic_0001>
module attributes {stable_mosaic.version = 11 : i64} {
  func.func @_quantize_kernel(%arg0: i32, %arg1: memref<32x128xf32, #tpu.memory_space<vmem>>, %arg2: memref<128x512xf32, #tpu.memory_space<vmem>>, %arg3: memref<512x128xf32, #tpu.memory_space<vmem>>, %arg4: memref<1x512xf32, #tpu.memory_space<vmem>>, %arg5: memref<32x128xf32, #tpu.memory_space<vmem>>, %arg6: memref<4x32xi32, #tpu.memory_space<vmem>>, %arg7: memref<1x8x128xf32, #tpu.memory_space<vmem>>) attributes {dimension_semantics = [#tpu.dimension_semantics<parallel>], iteration_bounds = array<i64: 1>, scalar_prefetch = 0 : i64, scratch_operands = 0 : i64, tpu.core_type = #tpu.core_type<tc>, window_params = [{transform_indices = @transform_0, window_bounds = array<i64: 32, 128>}, {pipeline_mode = #tpu.pipeline_mode<synchronous>, transform_indices = @transform_1, window_bounds = array<i64: 128, 512>}, {pipeline_mode = #tpu.pipeline_mode<synchronous>, transform_indices = @transform_2, window_bounds = array<i64: 512, 128>}, {pipeline_mode = #tpu.pipeline_mode<synchronous>, transform_indices = @transform_3, window_bounds = array<i64: 1, 512>}, {transform_indices = @transform_4, window_bounds = array<i64: 32, 128>}, {transform_indices = @transform_5, window_bounds = array<i64: 4, 32>}, {transform_indices = @transform_6, window_bounds = array<i64: 1, 8, 128>}]} {
    %c0 = arith.constant 0 : index
    %c0_0 = arith.constant 0 : index
    %0 = vector.load %arg1[%c0, %c0_0] : memref<32x128xf32, #tpu.memory_space<vmem>>, vector<32x128xf32>
    %c0_1 = arith.constant 0 : index
    %c0_2 = arith.constant 0 : index
    %1 = vector.load %arg2[%c0_1, %c0_2] : memref<128x512xf32, #tpu.memory_space<vmem>>, vector<128x512xf32>
    %c0_3 = arith.constant 0 : index
    %c0_4 = arith.constant 0 : index
    %2 = vector.load %arg3[%c0_3, %c0_4] : memref<512x128xf32, #tpu.memory_space<vmem>>, vector<512x128xf32>
    %c0_5 = arith.constant 0 : index
    %c0_6 = arith.constant 0 : index
    %3 = vector.load %arg4[%c0_5, %c0_6] : memref<1x512xf32, #tpu.memory_space<vmem>>, vector<1x512xf32>
    %cst = arith.constant dense<0.000000e+00> : vector<32x512xf32>
    %4 = tpu.matmul %0, %1, %cst {dimension_numbers = #tpu.dot_dimension_numbers<[1], [0], [0], [1], [0, 0, 1, 1], [], []>} : vector<32x128xf32>, vector<128x512xf32>, vector<32x512xf32> -> vector<32x512xf32>
    %5 = vector.broadcast %3 : vector<1x512xf32> to vector<32x512xf32>
    %6 = arith.addf %4, %5 : vector<32x512xf32>
    %7 = tpu.iota {dimensions = array<i32: 1>} : vector<32x128xi32>
    %8 = vector.extract_strided_slice %6 {offsets = [0, 0], sizes = [32, 128], strides = [1, 1]} : vector<32x512xf32> to vector<32x128xf32>
    %9 = tpu.reduce_index %8 {axis = 1 : i32, kind = #tpu.reduction_kind<arg_min>} : vector<32x128xf32> -> vector<32xi32>
    %10 = vector.shape_cast %9 : vector<32xi32> to vector<1x32xi32>
    %11 = vector.shape_cast %9 : vector<32xi32> to vector<32x1xi32>
    %12 = vector.broadcast %11 : vector<32x1xi32> to vector<32x128xi32>
    %13 = arith.cmpi eq, %12, %7 : vector<32x128xi32>
    %14 = arith.extui %13 : vector<32x128xi1> to vector<32x128xi32>
    %15 = arith.sitofp %14 : vector<32x128xi32> to vector<32x128xf32>
    %16 = vector.extract_strided_slice %6 {offsets = [0, 128], sizes = [32, 128], strides = [1, 1]} : vector<32x512xf32> to vector<32x128xf32>
    %17 = tpu.reduce_index %16 {axis = 1 : i32, kind = #tpu.reduction_kind<arg_min>} : vector<32x128xf32> -> vector<32xi32>
    %18 = vector.shape_cast %17 : vector<32xi32> to vector<1x32xi32>
    %19 = vector.shape_cast %17 : vector<32xi32> to vector<32x1xi32>
    %20 = vector.broadcast %19 : vector<32x1xi32> to vector<32x128xi32>
    %21 = arith.cmpi eq, %20, %7 : vector<32x128xi32>
    %22 = arith.extui %21 : vector<32x128xi1> to vector<32x128xi32>
    %23 = arith.sitofp %22 : vector<32x128xi32> to vector<32x128xf32>
    %24 = vector.extract_strided_slice %6 {offsets = [0, 256], sizes = [32, 128], strides = [1, 1]} : vector<32x512xf32> to vector<32x128xf32>
    %25 = tpu.reduce_index %24 {axis = 1 : i32, kind = #tpu.reduction_kind<arg_min>} : vector<32x128xf32> -> vector<32xi32>
    %26 = vector.shape_cast %25 : vector<32xi32> to vector<1x32xi32>
    %27 = vector.shape_cast %25 : vector<32xi32> to vector<32x1xi32>
    %28 = vector.broadcast %27 : vector<32x1xi32> to vector<32x128xi32>
    %29 = arith.cmpi eq, %28, %7 : vector<32x128xi32>
    %30 = arith.extui %29 : vector<32x128xi1> to vector<32x128xi32>
    %31 = arith.sitofp %30 : vector<32x128xi32> to vector<32x128xf32>
    %32 = vector.extract_strided_slice %6 {offsets = [0, 384], sizes = [32, 128], strides = [1, 1]} : vector<32x512xf32> to vector<32x128xf32>
    %33 = tpu.reduce_index %32 {axis = 1 : i32, kind = #tpu.reduction_kind<arg_min>} : vector<32x128xf32> -> vector<32xi32>
    %34 = vector.shape_cast %33 : vector<32xi32> to vector<1x32xi32>
    %35 = vector.shape_cast %33 : vector<32xi32> to vector<32x1xi32>
    %36 = vector.broadcast %35 : vector<32x1xi32> to vector<32x128xi32>
    %37 = arith.cmpi eq, %36, %7 : vector<32x128xi32>
    %38 = arith.extui %37 : vector<32x128xi1> to vector<32x128xi32>
    %39 = arith.sitofp %38 : vector<32x128xi32> to vector<32x128xf32>
    %40 = tpu.concatenate %10, %18, %26, %34 in 0 : vector<1x32xi32>, vector<1x32xi32>, vector<1x32xi32>, vector<1x32xi32> -> vector<4x32xi32>
    %c0_7 = arith.constant 0 : index
    %c0_8 = arith.constant 0 : index
    %41 = vector.load %arg6[%c0_7, %c0_8] : memref<4x32xi32, #tpu.memory_space<vmem>>, vector<4x32xi32>
    tpu.vector_store %arg6[%c0_7, %c0_8], %40 {strides = array<i32>} : memref<4x32xi32, #tpu.memory_space<vmem>>, vector<4x32xi32>,
    %42 = tpu.concatenate %15, %23, %31, %39 in 1 : vector<32x128xf32>, vector<32x128xf32>, vector<32x128xf32>, vector<32x128xf32> -> vector<32x512xf32>
    %cst_9 = arith.constant dense<0.000000e+00> : vector<32x128xf32>
    %43 = tpu.matmul %42, %2, %cst_9 {dimension_numbers = #tpu.dot_dimension_numbers<[1], [0], [0], [1], [0, 0, 1, 1], [], []>} : vector<32x512xf32>, vector<512x128xf32>, vector<32x128xf32> -> vector<32x128xf32>
    %c0_10 = arith.constant 0 : index
    %c0_11 = arith.constant 0 : index
    %44 = vector.load %arg5[%c0_10, %c0_11] : memref<32x128xf32, #tpu.memory_space<vmem>>, vector<32x128xf32>
    tpu.vector_store %arg5[%c0_10, %c0_11], %43 {strides = array<i32>} : memref<32x128xf32, #tpu.memory_space<vmem>>, vector<32x128xf32>,
    %45 = arith.subf %43, %0 : vector<32x128xf32>
    %46 = arith.mulf %45, %45 : vector<32x128xf32>
    %47 = vector.shape_cast %46 : vector<32x128xf32> to vector<4x8x128xf32>
    %cst_12 = arith.constant dense<0.000000e+00> : vector<8x128xf32>
    %48 = vector.multi_reduction <add>, %47, %cst_12 [0] : vector<4x8x128xf32> to vector<8x128xf32>
    %49 = vector.shape_cast %48 : vector<8x128xf32> to vector<1x8x128xf32>
    %c0_13 = arith.constant 0 : index
    %c0_14 = arith.constant 0 : index
    %c0_15 = arith.constant 0 : index
    %50 = vector.load %arg7[%c0_13, %c0_14, %c0_15] : memref<1x8x128xf32, #tpu.memory_space<vmem>>, vector<1x8x128xf32>
    tpu.vector_store %arg7[%c0_13, %c0_14, %c0_15], %49 {strides = array<i32>} : memref<1x8x128xf32, #tpu.memory_space<vmem>>, vector<1x8x128xf32>,
    return
  }
  func.func @transform_0(%arg0: i32) -> (i32, i32) {
    %c0_i32 = arith.constant 0 : i32
    %c0_i32_0 = arith.constant 0 : i32
    return %arg0, %c0_i32 : i32, i32
  }
  func.func @transform_1(%arg0: i32) -> (i32, i32) {
    %c0_i32 = arith.constant 0 : i32
    %c0_i32_0 = arith.constant 0 : i32
    %c0_i32_1 = arith.constant 0 : i32
    return %c0_i32, %c0_i32_0 : i32, i32
  }
  func.func @transform_2(%arg0: i32) -> (i32, i32) {
    %c0_i32 = arith.constant 0 : i32
    %c0_i32_0 = arith.constant 0 : i32
    %c0_i32_1 = arith.constant 0 : i32
    return %c0_i32, %c0_i32_0 : i32, i32
  }
  func.func @transform_3(%arg0: i32) -> (i32, i32) {
    %c0_i32 = arith.constant 0 : i32
    %c0_i32_0 = arith.constant 0 : i32
    %c0_i32_1 = arith.constant 0 : i32
    return %c0_i32, %c0_i32_0 : i32, i32
  }
  func.func @transform_4(%arg0: i32) -> (i32, i32) {
    %c0_i32 = arith.constant 0 : i32
    %c0_i32_0 = arith.constant 0 : i32
    return %arg0, %c0_i32 : i32, i32
  }
  func.func @transform_5(%arg0: i32) -> (i32, i32) {
    %c0_i32 = arith.constant 0 : i32
    %c0_i32_0 = arith.constant 0 : i32
    return %c0_i32, %arg0 : i32, i32
  }
  func.func @transform_6(%arg0: i32) -> (i32, i32, i32) {
    %c0_i32 = arith.constant 0 : i32
    %c0_i32_0 = arith.constant 0 : i32
    %c0_i32_1 = arith.constant 0 : i32
    return %arg0, %c0_i32, %c0_i32_0 : i32, i32, i32
  }
}

</mosaic_0001>

<llo_original>
// kernel: quantize_forward.1
$region0: #{quantize_forward.1}
  #allocation0 [shape = 'u32[]', space=smem, size = 0x4, offset = 0x4, fixed_abs, tag = 'smem constant byte address 0x4 - core index']
  #allocation1 [shape = 'u32[144,128]{1,0:T(1,128)}', space=vmem, size = 0x12000, scoped, tag = 'internal scratch']
  %s0 = inlined_call_operand.vmem [shape: f32[32,128], index: 0, kind: input, shape index: {}]
  %s1 = inlined_call_operand.vmem [shape: f32[128,512], index: 1, kind: input, shape index: {}]
  %s2 = inlined_call_operand.vmem [shape: f32[512,128], index: 2, kind: input, shape index: {}]
  %s3 = inlined_call_operand.vmem [shape: f32[1,512], index: 3, kind: input, shape index: {}]
  %s4 = inlined_call_operand.vmem [shape: f32[32,128], index: 4, kind: output, shape index: {0}]
  %s5 = inlined_call_operand.vmem [shape: s32[4,32], index: 5, kind: output, shape index: {1}]
  %s6 = inlined_call_operand.vmem [shape: f32[1,8,128], index: 6, kind: output, shape index: {2}]
  %7 = xla_tuple %s4, %s5, %s6
  %s8 = sld [smem:[#allocation0]]
  $region42: #{quantize_forward.1} parent=0
    _
  %s10 = ssub.s32 1, %s8
  %s11 = scalar_select 0, %s10, %s8
  // Predicated region
  $region2: #{quantize_forward.1} parent=0 // pred_check
    _
  $region3: #{quantize_forward.1} parent=0 // pred_check_branch
    %13 = sbr.rel (0) target = $region5
  $region4: #{quantize_forward.1} parent=0 // pred_region
    _
  $region5: #{quantize_forward.1} parent=0 // pred_fallthru
    _
  // Predicated region
  $region6: #{quantize_forward.1} parent=0 // pred_check
    _
  $region7: #{quantize_forward.1} parent=0 // pred_check_branch
    %15 = sbr.rel (0) target = $region9
  $region8: #{quantize_forward.1} parent=0 // pred_region
    _
  $region9: #{quantize_forward.1} parent=0 // pred_fallthru
    _
  // Predicated region
  $region10: #{quantize_forward.1} parent=0 // pred_check
    _
  $region11: #{quantize_forward.1} parent=0 // pred_check_branch
    %17 = sbr.rel (0) target = $region13
  $region12: #{quantize_forward.1} parent=0 // pred_region
    _
  $region13: #{quantize_forward.1} parent=0 // pred_fallthru
    _
  // Predicated region
  $region14: #{quantize_forward.1} parent=0 // pred_check
    _
  $region15: #{quantize_forward.1} parent=0 // pred_check_branch
    %19 = sbr.rel (0) target = $region17
  $region16: #{quantize_forward.1} parent=0 // pred_region
    _
  $region17: #{quantize_forward.1} parent=0 // pred_fallthru
    _
  %v20 = vld [vmem:[%s0] sm:$0xff]
  %v21 = vld [vmem:[%s0 + $0x8] sm:$0xff]
  %v22 = vld [vmem:[%s0 + $0x10] sm:$0xff]
  %v23 = vld [vmem:[%s0 + $0x18] sm:$0xff]
  %v24 = vld [vmem:[%s1] sm:$0xff]
  %v25 = vld [vmem:[%s1 + $0x8] sm:$0xff]
  %v26 = vld [vmem:[%s1 + $0x10] sm:$0xff]
  %v27 = vld [vmem:[%s1 + $0x18] sm:$0xff]
  %v28 = vld [vmem:[%s1 + $0x20] sm:$0xff]
  %v29 = vld [vmem:[%s1 + $0x28] sm:$0xff]
  %v30 = vld [vmem:[%s1 + $0x30] sm:$0xff]
  %v31 = vld [vmem:[%s1 + $0x38] sm:$0xff]
  %v32 = vld [vmem:[%s1 + $0x40] sm:$0xff]
  %v33 = vld [vmem:[%s1 + $0x48] sm:$0xff]
  %v34 = vld [vmem:[%s1 + $0x50] sm:$0xff]
  %v35 = vld [vmem:[%s1 + $0x58] sm:$0xff]
  %v36 = vld [vmem:[%s1 + $0x60] sm:$0xff]
  %v37 = vld [vmem:[%s1 + $0x68] sm:$0xff]
  %v38 = vld [vmem:[%s1 + $0x70] sm:$0xff]
  %v39 = vld [vmem:[%s1 + $0x78] sm:$0xff]
  %v40 = vld [vmem:[%s1 + $0x80] sm:$0xff]
  %v41 = vld [vmem:[%s1 + $0x88] sm:$0xff]
  %v42 = vld [vmem:[%s1 + $0x90] sm:$0xff]
  %v43 = vld [vmem:[%s1 + $0x98] sm:$0xff]
  %v44 = vld [vmem:[%s1 + $0xa0] sm:$0xff]
  %v45 = vld [vmem:[%s1 + $0xa8] sm:$0xff]
  %v46 = vld [vmem:[%s1 + $0xb0] sm:$0xff]
  %v47 = vld [vmem:[%s1 + $0xb8] sm:$0xff]
  %v48 = vld [vmem:[%s1 + $0xc0] sm:$0xff]
  %v49 = vld [vmem:[%s1 + $0xc8] sm:$0xff]
  %v50 = vld [vmem:[%s1 + $0xd0] sm:$0xff]
  %v51 = vld [vmem:[%s1 + $0xd8] sm:$0xff]
  %v52 = vld [vmem:[%s1 + $0xe0] sm:$0xff]
  %v53 = vld [vmem:[%s1 + $0xe8] sm:$0xff]
  %v54 = vld [vmem:[%s1 + $0xf0] sm:$0xff]
  %v55 = vld [vmem:[%s1 + $0xf8] sm:$0xff]
  %v56 = vld [vmem:[%s1 + $0x100] sm:$0xff]
  %v57 = vld [vmem:[%s1 + $0x108] sm:$0xff]
  %v58 = vld [vmem:[%s1 + $0x110] sm:$0xff]
  %v59 = vld [vmem:[%s1 + $0x118] sm:$0xff]
  %v60 = vld [vmem:[%s1 + $0x120] sm:$0xff]
  %v61 = vld [vmem:[%s1 + $0x128] sm:$0xff]
  %v62 = vld [vmem:[%s1 + $0x130] sm:$0xff]
  %v63 = vld [vmem:[%s1 + $0x138] sm:$0xff]
  %v64 = vld [vmem:[%s1 + $0x140] sm:$0xff]
  %v65 = vld [vmem:[%s1 + $0x148] sm:$0xff]
  %v66 = vld [vmem:[%s1 + $0x150] sm:$0xff]
  %v67 = vld [vmem:[%s1 + $0x158] sm:$0xff]
  %v68 = vld [vmem:[%s1 + $0x160] sm:$0xff]
  %v69 = vld [vmem:[%s1 + $0x168] sm:$0xff]
  %v70 = vld [vmem:[%s1 + $0x170] sm:$0xff]
  %v71 = vld [vmem:[%s1 + $0x178] sm:$0xff]
  %v72 = vld [vmem:[%s1 + $0x180] sm:$0xff]
  %v73 = vld [vmem:[%s1 + $0x188] sm:$0xff]
  %v74 = vld [vmem:[%s1 + $0x190] sm:$0xff]
  %v75 = vld [vmem:[%s1 + $0x198] sm:$0xff]
  %v76 = vld [vmem:[%s1 + $0x1a0] sm:$0xff]
  %v77 = vld [vmem:[%s1 + $0x1a8] sm:$0xff]
  %v78 = vld [vmem:[%s1 + $0x1b0] sm:$0xff]
  %v79 = vld [vmem:[%s1 + $0x1b8] sm:$0xff]
  %v80 = vld [vmem:[%s1 + $0x1c0] sm:$0xff]
  %v81 = vld [vmem:[%s1 + $0x1c8] sm:$0xff]
  %v82 = vld [vmem:[%s1 + $0x1d0] sm:$0xff]
  %v83 = vld [vmem:[%s1 + $0x1d8] sm:$0xff]
  %v84 = vld [vmem:[%s1 + $0x1e0] sm:$0xff]
  %v85 = vld [vmem:[%s1 + $0x1e8] sm:$0xff]
  %v86 = vld [vmem:[%s1 + $0x1f0] sm:$0xff]
  %v87 = vld [vmem:[%s1 + $0x1f8] sm:$0xff]
  %v88 = vld [vmem:[%s2] sm:$0xff]
  %v89 = vld [vmem:[%s2 + $0x8] sm:$0xff]
  %v90 = vld [vmem:[%s2 + $0x10] sm:$0xff]
  %v91 = vld [vmem:[%s2 + $0x18] sm:$0xff]
  %v92 = vld [vmem:[%s2 + $0x20] sm:$0xff]
  %v93 = vld [vmem:[%s2 + $0x28] sm:$0xff]
  %v94 = vld [vmem:[%s2 + $0x30] sm:$0xff]
  %v95 = vld [vmem:[%s2 + $0x38] sm:$0xff]
  %v96 = vld [vmem:[%s2 + $0x40] sm:$0xff]
  %v97 = vld [vmem:[%s2 + $0x48] sm:$0xff]
  %v98 = vld [vmem:[%s2 + $0x50] sm:$0xff]
  %v99 = vld [vmem:[%s2 + $0x58] sm:$0xff]
  %v100 = vld [vmem:[%s2 + $0x60] sm:$0xff]
  %v101 = vld [vmem:[%s2 + $0x68] sm:$0xff]
  %v102 = vld [vmem:[%s2 + $0x70] sm:$0xff]
  %v103 = vld [vmem:[%s2 + $0x78] sm:$0xff]
  %v104 = vld [vmem:[%s2 + $0x80] sm:$0xff]
  %v105 = vld [vmem:[%s2 + $0x88] sm:$0xff]
  %v106 = vld [vmem:[%s2 + $0x90] sm:$0xff]
  %v107 = vld [vmem:[%s2 + $0x98] sm:$0xff]
  %v108 = vld [vmem:[%s2 + $0xa0] sm:$0xff]
  %v109 = vld [vmem:[%s2 + $0xa8] sm:$0xff]
  %v110 = vld [vmem:[%s2 + $0xb0] sm:$0xff]
  %v111 = vld [vmem:[%s2 + $0xb8] sm:$0xff]
  %v112 = vld [vmem:[%s2 + $0xc0] sm:$0xff]
  %v113 = vld [vmem:[%s2 + $0xc8] sm:$0xff]
  %v114 = vld [vmem:[%s2 + $0xd0] sm:$0xff]
  %v115 = vld [vmem:[%s2 + $0xd8] sm:$0xff]
  %v116 = vld [vmem:[%s2 + $0xe0] sm:$0xff]
  %v117 = vld [vmem:[%s2 + $0xe8] sm:$0xff]
  %v118 = vld [vmem:[%s2 + $0xf0] sm:$0xff]
  %v119 = vld [vmem:[%s2 + $0xf8] sm:$0xff]
  %v120 = vld [vmem:[%s2 + $0x100] sm:$0xff]
  %v121 = vld [vmem:[%s2 + $0x108] sm:$0xff]
  %v122 = vld [vmem:[%s2 + $0x110] sm:$0xff]
  %v123 = vld [vmem:[%s2 + $0x118] sm:$0xff]
  %v124 = vld [vmem:[%s2 + $0x120] sm:$0xff]
  %v125 = vld [vmem:[%s2 + $0x128] sm:$0xff]
  %v126 = vld [vmem:[%s2 + $0x130] sm:$0xff]
  %v127 = vld [vmem:[%s2 + $0x138] sm:$0xff]
  %v128 = vld [vmem:[%s2 + $0x140] sm:$0xff]
  %v129 = vld [vmem:[%s2 + $0x148] sm:$0xff]
  %v130 = vld [vmem:[%s2 + $0x150] sm:$0xff]
  %v131 = vld [vmem:[%s2 + $0x158] sm:$0xff]
  %v132 = vld [vmem:[%s2 + $0x160] sm:$0xff]
  %v133 = vld [vmem:[%s2 + $0x168] sm:$0xff]
  %v134 = vld [vmem:[%s2 + $0x170] sm:$0xff]
  %v135 = vld [vmem:[%s2 + $0x178] sm:$0xff]
  %v136 = vld [vmem:[%s2 + $0x180] sm:$0xff]
  %v137 = vld [vmem:[%s2 + $0x188] sm:$0xff]
  %v138 = vld [vmem:[%s2 + $0x190] sm:$0xff]
  %v139 = vld [vmem:[%s2 + $0x198] sm:$0xff]
  %v140 = vld [vmem:[%s2 + $0x1a0] sm:$0xff]
  %v141 = vld [vmem:[%s2 + $0x1a8] sm:$0xff]
  %v142 = vld [vmem:[%s2 + $0x1b0] sm:$0xff]
  %v143 = vld [vmem:[%s2 + $0x1b8] sm:$0xff]
  %v144 = vld [vmem:[%s2 + $0x1c0] sm:$0xff]
  %v145 = vld [vmem:[%s2 + $0x1c8] sm:$0xff]
  %v146 = vld [vmem:[%s2 + $0x1d0] sm:$0xff]
  %v147 = vld [vmem:[%s2 + $0x1d8] sm:$0xff]
  %v148 = vld [vmem:[%s2 + $0x1e0] sm:$0xff]
  %v149 = vld [vmem:[%s2 + $0x1e8] sm:$0xff]
  %v150 = vld [vmem:[%s2 + $0x1f0] sm:$0xff]
  %v151 = vld [vmem:[%s2 + $0x1f8] sm:$0xff]
  %v152 = vld [vmem:[%s3] sm:$0xf]
  %v154 = vlaneseq
  %v155 = vshrl.u32 %v154, 7
  %v156 = vsub.s32 0, %v155
  %v157 = vrot.slane %v152, %v156
  %v158 = vlaneseq
  %v159 = vshrl.u32 %v158, 7
  %v160 = vsub.s32 1, %v159
  %v161 = vrot.slane %v152, %v160
  %v162 = vlaneseq
  %v163 = vshrl.u32 %v162, 7
  %v164 = vsub.s32 2, %v163
  %v165 = vrot.slane %v152, %v164
  %v166 = vlaneseq
  %v167 = vshrl.u32 %v166, 7
  %v168 = vsub.s32 3, %v167
  %v169 = vrot.slane %v152, %v168
  %174 = vmatprep.subr.mxu0 %v25
  %175 = vmatpush1.msra.mxu0 %v24
  %176 = vmatprep.subr.mxu0 %v29
  %177 = vmatpush1.msra.mxu0 %v28
  %178 = vmatprep.subr.mxu0 %v33
  %179 = vmatpush1.msra.mxu0 %v32
  %180 = vmatprep.subr.mxu0 %v37
  %181 = vmatpush1.msra.mxu0 %v36
  %182 = vmatprep.subr.mxu0 %v41
  %183 = vmatpush1.msra.mxu0 %v40
  %184 = vmatprep.subr.mxu0 %v45
  %185 = vmatpush1.msra.mxu0 %v44
  %186 = vmatprep.subr.mxu0 %v49
  %187 = vmatpush1.msra.mxu0 %v48
  %188 = vmatprep.subr.mxu0 %v53
  %189 = vmatpush1.msra.mxu0 %v52
  %190 = vmatprep.subr.mxu0 %v57
  %191 = vmatpush1.msra.mxu0 %v56
  %192 = vmatprep.subr.mxu0 %v61
  %193 = vmatpush1.msra.mxu0 %v60
  %194 = vmatprep.subr.mxu0 %v65
  %195 = vmatpush1.msra.mxu0 %v64
  %196 = vmatprep.subr.mxu0 %v69
  %197 = vmatpush1.msra.mxu0 %v68
  %198 = vmatprep.subr.mxu0 %v73
  %199 = vmatpush1.msra.mxu0 %v72
  %200 = vmatprep.subr.mxu0 %v77
  %201 = vmatpush1.msra.mxu0 %v76
  %202 = vmatprep.subr.mxu0 %v81
  %203 = vmatpush1.msra.mxu0 %v80
  %204 = vmatprep.subr.mxu0 %v85
  %205 = vmatpush1.msra.mxu0 %v84
  %206 = vmatprep.subr.mxu0 0.0
  %207 = vmatpush1.msra.mxu0 0.0
  %208 = vmatprep.subr.mxu0 0.0
  %209 = vmatpush1.msra.mxu0 0.0
  %210 = vmatprep.subr.mxu0 0.0
  %211 = vmatpush1.msra.mxu0 0.0
  %212 = vmatprep.subr.mxu0 0.0
  %213 = vmatpush1.msra.mxu0 0.0
  %214 = vmatprep.subr.mxu0 0.0
  %215 = vmatpush1.msra.mxu0 0.0
  %216 = vmatprep.subr.mxu0 0.0
  %217 = vmatpush1.msra.mxu0 0.0
  %218 = vmatprep.subr.mxu0 0.0
  %219 = vmatpush1.msra.mxu0 0.0
  %220 = vmatprep.subr.mxu0 0.0
  %221 = vmatpush1.msra.mxu0 0.0
  %222 = vmatprep.subr.mxu0 0.0
  %223 = vmatpush1.msra.mxu0 0.0
  %224 = vmatprep.subr.mxu0 0.0
  %225 = vmatpush1.msra.mxu0 0.0
  %226 = vmatprep.subr.mxu0 0.0
  %227 = vmatpush1.msra.mxu0 0.0
  %228 = vmatprep.subr.mxu0 0.0
  %229 = vmatpush1.msra.mxu0 0.0
  %230 = vmatprep.subr.mxu0 0.0
  %231 = vmatpush1.msra.mxu0 0.0
  %232 = vmatprep.subr.mxu0 0.0
  %233 = vmatpush1.msra.mxu0 0.0
  %234 = vmatprep.subr.mxu0 0.0
  %235 = vmatpush1.msra.mxu0 0.0
  %236 = vmatprep.subr.mxu0 0.0
  %237 = vmatpush1.msra.mxu0 0.0
  %238 = vmatprep.mubr.f32.mxu0 0.0
  %239 = vmatmul.mubr.f32.gmra.mrb[0].mxu0 %v20
  %v240 = vpop.f32.mrb[0].mxu0
  %v241 = vadd.f32 %v157, %v240
  %v242 = vpop.f32.mrb[0].mxu0
  %v243 = vadd.f32 %v161, %v242
  %244 = vmatprep.mubr.f32.mxu0 0.0
  %245 = vmatmul.mubr.f32.gmra.mrb[0].mxu0 %v21
  %v246 = vpop.f32.mrb[0].mxu0
  %v247 = vadd.f32 %v157, %v246
  %v248 = vpop.f32.mrb[0].mxu0
  %v249 = vadd.f32 %v161, %v248
  %250 = vmatprep.mubr.f32.mxu0 0.0
  %251 = vmatmul.mubr.f32.gmra.mrb[0].mxu0 %v22
  %v252 = vpop.f32.mrb[0].mxu0
  %v253 = vadd.f32 %v157, %v252
  %v254 = vpop.f32.mrb[0].mxu0
  %v255 = vadd.f32 %v161, %v254
  %256 = vmatprep.mubr.f32.mxu0 0.0
  %257 = vmatmul.mubr.f32.gmra.mrb[0].mxu0 %v23
  %v258 = vpop.f32.mrb[0].mxu0
  %v259 = vadd.f32 %v157, %v258
  %v260 = vpop.f32.mrb[0].mxu0
  %v261 = vadd.f32 %v161, %v260
  %262 = vdwg.mxu0
  %263 = vmatprep.subr.mxu0 %v27
  %264 = vmatpush1.msra.mxu0 %v26
  %265 = vmatprep.subr.mxu0 %v31
  %266 = vmatpush1.msra.mxu0 %v30
  %267 = vmatprep.subr.mxu0 %v35
  %268 = vmatpush1.msra.mxu0 %v34
  %269 = vmatprep.subr.mxu0 %v39
  %270 = vmatpush1.msra.mxu0 %v38
  %271 = vmatprep.subr.mxu0 %v43
  %272 = vmatpush1.msra.mxu0 %v42
  %273 = vmatprep.subr.mxu0 %v47
  %274 = vmatpush1.msra.mxu0 %v46
  %275 = vmatprep.subr.mxu0 %v51
  %276 = vmatpush1.msra.mxu0 %v50
  %277 = vmatprep.subr.mxu0 %v55
  %278 = vmatpush1.msra.mxu0 %v54
  %279 = vmatprep.subr.mxu0 %v59
  %280 = vmatpush1.msra.mxu0 %v58
  %281 = vmatprep.subr.mxu0 %v63
  %282 = vmatpush1.msra.mxu0 %v62
  %283 = vmatprep.subr.mxu0 %v67
  %284 = vmatpush1.msra.mxu0 %v66
  %285 = vmatprep.subr.mxu0 %v71
  %286 = vmatpush1.msra.mxu0 %v70
  %287 = vmatprep.subr.mxu0 %v75
  %288 = vmatpush1.msra.mxu0 %v74
  %289 = vmatprep.subr.mxu0 %v79
  %290 = vmatpush1.msra.mxu0 %v78
  %291 = vmatprep.subr.mxu0 %v83
  %292 = vmatpush1.msra.mxu0 %v82
  %293 = vmatprep.subr.mxu0 %v87
  %294 = vmatpush1.msra.mxu0 %v86
  %295 = vmatprep.subr.mxu0 0.0
  %296 = vmatpush1.msra.mxu0 0.0
  %297 = vmatprep.subr.mxu0 0.0
  %298 = vmatpush1.msra.mxu0 0.0
  %299 = vmatprep.subr.mxu0 0.0
  %300 = vmatpush1.msra.mxu0 0.0
  %301 = vmatprep.subr.mxu0 0.0
  %302 = vmatpush1.msra.mxu0 0.0
  %303 = vmatprep.subr.mxu0 0.0
  %304 = vmatpush1.msra.mxu0 0.0
  %305 = vmatprep.subr.mxu0 0.0
  %306 = vmatpush1.msra.mxu0 0.0
  %307 = vmatprep.subr.mxu0 0.0
  %308 = vmatpush1.msra.mxu0 0.0
  %309 = vmatprep.subr.mxu0 0.0
  %310 = vmatpush1.msra.mxu0 0.0
  %311 = vmatprep.subr.mxu0 0.0
  %312 = vmatpush1.msra.mxu0 0.0
  %313 = vmatprep.subr.mxu0 0.0
  %314 = vmatpush1.msra.mxu0 0.0
  %315 = vmatprep.subr.mxu0 0.0
  %316 = vmatpush1.msra.mxu0 0.0
  %317 = vmatprep.subr.mxu0 0.0
  %318 = vmatpush1.msra.mxu0 0.0
  %319 = vmatprep.subr.mxu0 0.0
  %320 = vmatpush1.msra.mxu0 0.0
  %321 = vmatprep.subr.mxu0 0.0
  %322 = vmatpush1.msra.mxu0 0.0
  %323 = vmatprep.subr.mxu0 0.0
  %324 = vmatpush1.msra.mxu0 0.0
  %325 = vmatprep.subr.mxu0 0.0
  %326 = vmatpush1.msra.mxu0 0.0
  %327 = vmatprep.mubr.f32.mxu0 0.0
  %328 = vmatmul.mubr.f32.gmra.mrb[0].mxu0 %v20
  %v329 = vpop.f32.mrb[0].mxu0
  %v330 = vadd.f32 %v165, %v329
  %v331 = vpop.f32.mrb[0].mxu0
  %v332 = vadd.f32 %v169, %v331
  %333 = vmatprep.mubr.f32.mxu0 0.0
  %334 = vmatmul.mubr.f32.gmra.mrb[0].mxu0 %v21
  %v335 = vpop.f32.mrb[0].mxu0
  %v336 = vadd.f32 %v165, %v335
  %v337 = vpop.f32.mrb[0].mxu0
  %v338 = vadd.f32 %v169, %v337
  %339 = vmatprep.mubr.f32.mxu0 0.0
  %340 = vmatmul.mubr.f32.gmra.mrb[0].mxu0 %v22
  %v341 = vpop.f32.mrb[0].mxu0
  %v342 = vadd.f32 %v165, %v341
  %v343 = vpop.f32.mrb[0].mxu0
  %v344 = vadd.f32 %v169, %v343
  %345 = vmatprep.mubr.f32.mxu0 0.0
  %346 = vmatmul.mubr.f32.gmra.mrb[0].mxu0 %v23
  %v347 = vpop.f32.mrb[0].mxu0
  %v348 = vadd.f32 %v165, %v347
  %v349 = vpop.f32.mrb[0].mxu0
  %v350 = vadd.f32 %v169, %v349
  %351 = vdwg.mxu0
  %v352 = vlaneseq
  %v353 = vand.u32 %v352, 127
  %354 = vmin.index.xlane.f32.xlu0 %v241
  %v355 = vpop.xlane.xlu0 %354
  %356 = vmin.index.xlane.f32.xlu0 %v247
  %v357 = vpop.xlane.xlu0 %356
  %358 = vmin.index.xlane.f32.xlu0 %v253
  %v359 = vpop.xlane.xlu0 %358
  %360 = vmin.index.xlane.f32.xlu0 %v259
  %v361 = vpop.xlane.xlu0 %360
  %vm362 = vcmp.eq.s32.totalorder %v355, %v353
  %vm363 = vcmp.eq.s32.totalorder %v357, %v353
  %vm364 = vcmp.eq.s32.totalorder %v359, %v353
  %vm365 = vcmp.eq.s32.totalorder %v361, %v353
  %v366 = vsel %vm362, 1, 0
  %v367 = vsel %vm363, 1, 0
  %v368 = vsel %vm364, 1, 0
  %v369 = vsel %vm365, 1, 0
  %v370 = vcvt.s32.f32 %v366
  %v371 = vcvt.s32.f32 %v367
  %v372 = vcvt.s32.f32 %v368
  %v373 = vcvt.s32.f32 %v369
  %374 = vmin.index.xlane.f32.xlu0 %v243
  %v375 = vpop.xlane.xlu0 %374
  %376 = vmin.index.xlane.f32.xlu0 %v249
  %v377 = vpop.xlane.xlu0 %376
  %378 = vmin.index.xlane.f32.xlu0 %v255
  %v379 = vpop.xlane.xlu0 %378
  %380 = vmin.index.xlane.f32.xlu0 %v261
  %v381 = vpop.xlane.xlu0 %380
  %vm382 = vcmp.eq.s32.totalorder %v375, %v353
  %vm383 = vcmp.eq.s32.totalorder %v377, %v353
  %vm384 = vcmp.eq.s32.totalorder %v379, %v353
  %vm385 = vcmp.eq.s32.totalorder %v381, %v353
  %v386 = vsel %vm382, 1, 0
  %v387 = vsel %vm383, 1, 0
  %v388 = vsel %vm384, 1, 0
  %v389 = vsel %vm385, 1, 0
  %v390 = vcvt.s32.f32 %v386
  %v391 = vcvt.s32.f32 %v387
  %v392 = vcvt.s32.f32 %v388
  %v393 = vcvt.s32.f32 %v389
  %394 = vmin.index.xlane.f32.xlu0 %v330
  %v395 = vpop.xlane.xlu0 %394
  %396 = vmin.index.xlane.f32.xlu0 %v336
  %v397 = vpop.xlane.xlu0 %396
  %398 = vmin.index.xlane.f32.xlu0 %v342
  %v399 = vpop.xlane.xlu0 %398
  %400 = vmin.index.xlane.f32.xlu0 %v348
  %v401 = vpop.xlane.xlu0 %400
  %vm402 = vcmp.eq.s32.totalorder %v395, %v353
  %vm403 = vcmp.eq.s32.totalorder %v397, %v353
  %vm404 = vcmp.eq.s32.totalorder %v399, %v353
  %vm405 = vcmp.eq.s32.totalorder %v401, %v353
  %v406 = vsel %vm402, 1, 0
  %v407 = vsel %vm403, 1, 0
  %v408 = vsel %vm404, 1, 0
  %v409 = vsel %vm405, 1, 0
  %v410 = vcvt.s32.f32 %v406
  %v411 = vcvt.s32.f32 %v407
  %v412 = vcvt.s32.f32 %v408
  %v413 = vcvt.s32.f32 %v409
  %414 = vmin.index.xlane.f32.xlu0 %v332
  %v415 = vpop.xlane.xlu0 %414
  %416 = vmin.index.xlane.f32.xlu0 %v338
  %v417 = vpop.xlane.xlu0 %416
  %418 = vmin.index.xlane.f32.xlu0 %v344
  %v419 = vpop.xlane.xlu0 %418
  %420 = vmin.index.xlane.f32.xlu0 %v350
  %v421 = vpop.xlane.xlu0 %420
  %vm422 = vcmp.eq.s32.totalorder %v415, %v353
  %vm423 = vcmp.eq.s32.totalorder %v417, %v353
  %vm424 = vcmp.eq.s32.totalorder %v419, %v353
  %vm425 = vcmp.eq.s32.totalorder %v421, %v353
  %v426 = vsel %vm422, 1, 0
  %v427 = vsel %vm423, 1, 0
  %v428 = vsel %vm424, 1, 0
  %v429 = vsel %vm425, 1, 0
  %v430 = vcvt.s32.f32 %v426
  %v431 = vcvt.s32.f32 %v427
  %v432 = vcvt.s32.f32 %v428
  %v433 = vcvt.s32.f32 %v429
  %v434 = vlaneseq
  %v435 = vshrl.u32 %v434, 7
  %v436 = vsub.s32 %v353, %v435
  %v437 = vrot.slane %v355, %v436
  %v438 = vadd.s32 %v353, 4294967288
  %v439 = vlaneseq
  %v440 = vshrl.u32 %v439, 7
  %v441 = vsub.s32 %v438, %v440
  %v442 = vrot.slane %v357, %v441
  %vm443 = vcmask 130112
  %v444 = vsel %vm443, %v442, %v437
  %v445 = vadd.s32 %v353, 4294967280
  %v446 = vlaneseq
  %v447 = vshrl.u32 %v446, 7
  %v448 = vsub.s32 %v445, %v447
  %v449 = vrot.slane %v359, %v448
  %vm450 = vcmask 195712
  %v451 = vsel %vm450, %v449, %v444
  %v452 = vadd.s32 %v353, 4294967272
  %v453 = vlaneseq
  %v454 = vshrl.u32 %v453, 7
  %v455 = vsub.s32 %v452, %v454
  %v456 = vrot.slane %v361, %v455
  %vm457 = vcmask 261312
  %v458 = vsel %vm457, %v456, %v451
  %v459 = vlaneseq
  %v460 = vshrl.u32 %v459, 7
  %v461 = vsub.s32 %v353, %v460
  %v462 = vrot.slane %v375, %v461
  %v463 = vlaneseq
  %v464 = vshrl.u32 %v463, 7
  %v465 = vsub.s32 %v438, %v464
  %v466 = vrot.slane %v377, %v465
  %v467 = vsel %vm443, %v466, %v462
  %v468 = vlaneseq
  %v469 = vshrl.u32 %v468, 7
  %v470 = vsub.s32 %v445, %v469
  %v471 = vrot.slane %v379, %v470
  %v472 = vsel %vm450, %v471, %v467
  %v473 = vlaneseq
  %v474 = vshrl.u32 %v473, 7
  %v475 = vsub.s32 %v452, %v474
  %v476 = vrot.slane %v381, %v475
  %v477 = vsel %vm457, %v476, %v472
  %v478 = vlaneseq
  %v479 = vshrl.u32 %v478, 7
  %v480 = vsub.s32 %v353, %v479
  %v481 = vrot.slane %v395, %v480
  %v482 = vlaneseq
  %v483 = vshrl.u32 %v482, 7
  %v484 = vsub.s32 %v438, %v483
  %v485 = vrot.slane %v397, %v484
  %v486 = vsel %vm443, %v485, %v481
  %v487 = vlaneseq
  %v488 = vshrl.u32 %v487, 7
  %v489 = vsub.s32 %v445, %v488
  %v490 = vrot.slane %v399, %v489
  %v491 = vsel %vm450, %v490, %v486
  %v492 = vlaneseq
  %v493 = vshrl.u32 %v492, 7
  %v494 = vsub.s32 %v452, %v493
  %v495 = vrot.slane %v401, %v494
  %v496 = vsel %vm457, %v495, %v491
  %v497 = vlaneseq
  %v498 = vshrl.u32 %v497, 7
  %v499 = vsub.s32 %v353, %v498
  %v500 = vrot.slane %v415, %v499
  %v501 = vlaneseq
  %v502 = vshrl.u32 %v501, 7
  %v503 = vsub.s32 %v438, %v502
  %v504 = vrot.slane %v417, %v503
  %v505 = vsel %vm443, %v504, %v500
  %v506 = vlaneseq
  %v507 = vshrl.u32 %v506, 7
  %v508 = vsub.s32 %v445, %v507
  %v509 = vrot.slane %v419, %v508
  %v510 = vsel %vm450, %v509, %v505
  %v511 = vlaneseq
  %v512 = vshrl.u32 %v511, 7
  %v513 = vsub.s32 %v452, %v512
  %v514 = vrot.slane %v421, %v513
  %v515 = vsel %vm457, %v514, %v510
  %vm516 = vcmask 1040384
  %v517 = vsel %vm516, %v458, %v477
  %vm518 = vcmask 1041408
  %v519 = vsel %vm518, %v517, %v496
  %vm520 = vcmask 1042432
  %v521 = vsel %vm520, %v519, %v515
  %vm522 = vcmask 257024
  %523 = vst.msk [vmem:[%s5] sm:$0xf] %vm522, %v521
  %524 = vmatprep.subr.mxu0 0.0
  %525 = vmatpush1.msra.mxu0 %v88
  %526 = vmatprep.subr.mxu0 0.0
  %527 = vmatpush1.msra.mxu0 %v89
  %528 = vmatprep.subr.mxu0 0.0
  %529 = vmatpush1.msra.mxu0 %v90
  %530 = vmatprep.subr.mxu0 0.0
  %531 = vmatpush1.msra.mxu0 %v91
  %532 = vmatprep.subr.mxu0 0.0
  %533 = vmatpush1.msra.mxu0 %v92
  %534 = vmatprep.subr.mxu0 0.0
  %535 = vmatpush1.msra.mxu0 %v93
  %536 = vmatprep.subr.mxu0 0.0
  %537 = vmatpush1.msra.mxu0 %v94
  %538 = vmatprep.subr.mxu0 0.0
  %539 = vmatpush1.msra.mxu0 %v95
  %540 = vmatprep.subr.mxu0 0.0
  %541 = vmatpush1.msra.mxu0 %v96
  %542 = vmatprep.subr.mxu0 0.0
  %543 = vmatpush1.msra.mxu0 %v97
  %544 = vmatprep.subr.mxu0 0.0
  %545 = vmatpush1.msra.mxu0 %v98
  %546 = vmatprep.subr.mxu0 0.0
  %547 = vmatpush1.msra.mxu0 %v99
  %548 = vmatprep.subr.mxu0 0.0
  %549 = vmatpush1.msra.mxu0 %v100
  %550 = vmatprep.subr.mxu0 0.0
  %551 = vmatpush1.msra.mxu0 %v101
  %552 = vmatprep.subr.mxu0 0.0
  %553 = vmatpush1.msra.mxu0 %v102
  %554 = vmatprep.subr.mxu0 0.0
  %555 = vmatpush1.msra.mxu0 %v103
  %556 = vmatprep.subr.mxu0 0.0
  %557 = vmatpush1.msra.mxu0 %v104
  %558 = vmatprep.subr.mxu0 0.0
  %559 = vmatpush1.msra.mxu0 %v105
  %560 = vmatprep.subr.mxu0 0.0
  %561 = vmatpush1.msra.mxu0 %v106
  %562 = vmatprep.subr.mxu0 0.0
  %563 = vmatpush1.msra.mxu0 %v107
  %564 = vmatprep.subr.mxu0 0.0
  %565 = vmatpush1.msra.mxu0 %v108
  %566 = vmatprep.subr.mxu0 0.0
  %567 = vmatpush1.msra.mxu0 %v109
  %568 = vmatprep.subr.mxu0 0.0
  %569 = vmatpush1.msra.mxu0 %v110
  %570 = vmatprep.subr.mxu0 0.0
  %571 = vmatpush1.msra.mxu0 %v111
  %572 = vmatprep.subr.mxu0 0.0
  %573 = vmatpush1.msra.mxu0 %v112
  %574 = vmatprep.subr.mxu0 0.0
  %575 = vmatpush1.msra.mxu0 %v113
  %576 = vmatprep.subr.mxu0 0.0
  %577 = vmatpush1.msra.mxu0 %v114
  %578 = vmatprep.subr.mxu0 0.0
  %579 = vmatpush1.msra.mxu0 %v115
  %580 = vmatprep.subr.mxu0 0.0
  %581 = vmatpush1.msra.mxu0 %v116
  %582 = vmatprep.subr.mxu0 0.0
  %583 = vmatpush1.msra.mxu0 %v117
  %584 = vmatprep.subr.mxu0 0.0
  %585 = vmatpush1.msra.mxu0 %v118
  %586 = vmatprep.subr.mxu0 0.0
  %587 = vmatpush1.msra.mxu0 %v119
  %588 = vmatprep.mubr.f32.mxu0 %v390
  %589 = vmatmul.mubr.f32.gmra.mrb[0].mxu0 %v370
  %v590 = vpop.f32.mrb[0].mxu0
  %v591 = vadd.f32 0.0, %v590
  %v592 = vpop.f32.mrb[0].mxu0
  %593 = vmatprep.mubr.f32.mxu0 %v391
  %594 = vmatmul.mubr.f32.gmra.mrb[0].mxu0 %v371
  %v595 = vpop.f32.mrb[0].mxu0
  %v596 = vadd.f32 0.0, %v595
  %v597 = vpop.f32.mrb[0].mxu0
  %598 = vmatprep.mubr.f32.mxu0 %v392
  %599 = vmatmul.mubr.f32.gmra.mrb[0].mxu0 %v372
  %v600 = vpop.f32.mrb[0].mxu0
  %v601 = vadd.f32 0.0, %v600
  %v602 = vpop.f32.mrb[0].mxu0
  %603 = vmatprep.mubr.f32.mxu0 %v393
  %604 = vmatmul.mubr.f32.gmra.mrb[0].mxu0 %v373
  %v605 = vpop.f32.mrb[0].mxu0
  %v606 = vadd.f32 0.0, %v605
  %v607 = vpop.f32.mrb[0].mxu0
  %608 = vdwg.mxu0
  %609 = vmatprep.subr.mxu0 0.0
  %610 = vmatpush1.msra.mxu0 %v120
  %611 = vmatprep.subr.mxu0 0.0
  %612 = vmatpush1.msra.mxu0 %v121
  %613 = vmatprep.subr.mxu0 0.0
  %614 = vmatpush1.msra.mxu0 %v122
  %615 = vmatprep.subr.mxu0 0.0
  %616 = vmatpush1.msra.mxu0 %v123
  %617 = vmatprep.subr.mxu0 0.0
  %618 = vmatpush1.msra.mxu0 %v124
  %619 = vmatprep.subr.mxu0 0.0
  %620 = vmatpush1.msra.mxu0 %v125
  %621 = vmatprep.subr.mxu0 0.0
  %622 = vmatpush1.msra.mxu0 %v126
  %623 = vmatprep.subr.mxu0 0.0
  %624 = vmatpush1.msra.mxu0 %v127
  %625 = vmatprep.subr.mxu0 0.0
  %626 = vmatpush1.msra.mxu0 %v128
  %627 = vmatprep.subr.mxu0 0.0
  %628 = vmatpush1.msra.mxu0 %v129
  %629 = vmatprep.subr.mxu0 0.0
  %630 = vmatpush1.msra.mxu0 %v130
  %631 = vmatprep.subr.mxu0 0.0
  %632 = vmatpush1.msra.mxu0 %v131
  %633 = vmatprep.subr.mxu0 0.0
  %634 = vmatpush1.msra.mxu0 %v132
  %635 = vmatprep.subr.mxu0 0.0
  %636 = vmatpush1.msra.mxu0 %v133
  %637 = vmatprep.subr.mxu0 0.0
  %638 = vmatpush1.msra.mxu0 %v134
  %639 = vmatprep.subr.mxu0 0.0
  %640 = vmatpush1.msra.mxu0 %v135
  %641 = vmatprep.subr.mxu0 0.0
  %642 = vmatpush1.msra.mxu0 %v136
  %643 = vmatprep.subr.mxu0 0.0
  %644 = vmatpush1.msra.mxu0 %v137
  %645 = vmatprep.subr.mxu0 0.0
  %646 = vmatpush1.msra.mxu0 %v138
  %647 = vmatprep.subr.mxu0 0.0
  %648 = vmatpush1.msra.mxu0 %v139
  %649 = vmatprep.subr.mxu0 0.0
  %650 = vmatpush1.msra.mxu0 %v140
  %651 = vmatprep.subr.mxu0 0.0
  %652 = vmatpush1.msra.mxu0 %v141
  %653 = vmatprep.subr.mxu0 0.0
  %654 = vmatpush1.msra.mxu0 %v142
  %655 = vmatprep.subr.mxu0 0.0
  %656 = vmatpush1.msra.mxu0 %v143
  %657 = vmatprep.subr.mxu0 0.0
  %658 = vmatpush1.msra.mxu0 %v144
  %659 = vmatprep.subr.mxu0 0.0
  %660 = vmatpush1.msra.mxu0 %v145
  %661 = vmatprep.subr.mxu0 0.0
  %662 = vmatpush1.msra.mxu0 %v146
  %663 = vmatprep.subr.mxu0 0.0
  %664 = vmatpush1.msra.mxu0 %v147
  %665 = vmatprep.subr.mxu0 0.0
  %666 = vmatpush1.msra.mxu0 %v148
  %667 = vmatprep.subr.mxu0 0.0
  %668 = vmatpush1.msra.mxu0 %v149
  %669 = vmatprep.subr.mxu0 0.0
  %670 = vmatpush1.msra.mxu0 %v150
  %671 = vmatprep.subr.mxu0 0.0
  %672 = vmatpush1.msra.mxu0 %v151
  %673 = vmatprep.mubr.f32.mxu0 %v430
  %674 = vmatmul.mubr.f32.gmra.mrb[0].mxu0 %v410
  %v675 = vpop.f32.mrb[0].mxu0
  %v676 = vadd.f32 %v591, %v675
  %v677 = vpop.f32.mrb[0].mxu0
  %678 = vmatprep.mubr.f32.mxu0 %v431
  %679 = vmatmul.mubr.f32.gmra.mrb[0].mxu0 %v411
  %v680 = vpop.f32.mrb[0].mxu0
  %v681 = vadd.f32 %v596, %v680
  %v682 = vpop.f32.mrb[0].mxu0
  %683 = vmatprep.mubr.f32.mxu0 %v432
  %684 = vmatmul.mubr.f32.gmra.mrb[0].mxu0 %v412
  %v685 = vpop.f32.mrb[0].mxu0
  %v686 = vadd.f32 %v601, %v685
  %v687 = vpop.f32.mrb[0].mxu0
  %688 = vmatprep.mubr.f32.mxu0 %v433
  %689 = vmatmul.mubr.f32.gmra.mrb[0].mxu0 %v413
  %v690 = vpop.f32.mrb[0].mxu0
  %v691 = vadd.f32 %v606, %v690
  %v692 = vpop.f32.mrb[0].mxu0
  %693 = vdwg.mxu0
  %694 = vst [vmem:[%s4] sm:$0xff] %v676
  %695 = vst [vmem:[%s4 + $0x8] sm:$0xff] %v681
  %696 = vst [vmem:[%s4 + $0x10] sm:$0xff] %v686
  %697 = vst [vmem:[%s4 + $0x18] sm:$0xff] %v691
  %v698 = vsub.f32 %v676, %v20
  %v699 = vsub.f32 %v681, %v21
  %v700 = vsub.f32 %v686, %v22
  %v701 = vsub.f32 %v691, %v23
  %v702 = vmul.f32 %v698, %v698
  %v703 = vmul.f32 %v699, %v699
  %v704 = vmul.f32 %v700, %v700
  %v705 = vmul.f32 %v701, %v701
  %v706 = vadd.f32 %v702, %v703
  %v707 = vadd.f32 %v706, %v704
  %v708 = vadd.f32 %v707, %v705
  %709 = vst [vmem:[%s6] sm:$0xff] %v708
  // Predicated region
  $region18: #{quantize_forward.1} parent=0 // pred_check
    _
  $region19: #{quantize_forward.1} parent=0 // pred_check_branch
    %711 = sbr.rel (0) target = $region21
  $region20: #{quantize_forward.1} parent=0 // pred_region
    _
  $region21: #{quantize_forward.1} parent=0 // pred_fallthru
    _
  // Predicated region
  $region22: #{quantize_forward.1} parent=0 // pred_check
    _
  $region23: #{quantize_forward.1} parent=0 // pred_check_branch
    %713 = sbr.rel (0) target = $region25
  $region24: #{quantize_forward.1} parent=0 // pred_region
    _
  $region25: #{quantize_forward.1} parent=0 // pred_fallthru
    _
  // Predicated region
  $region26: #{quantize_forward.1} parent=0 // pred_check
    _
  $region27: #{quantize_forward.1} parent=0 // pred_check_branch
    %715 = sbr.rel (0) target = $region29
  $region28: #{quantize_forward.1} parent=0 // pred_region
    _
  $region29: #{quantize_forward.1} parent=0 // pred_fallthru
    _
  // Predicated region
  $region30: #{quantize_forward.1} parent=0 // pred_check
    _
  $region31: #{quantize_forward.1} parent=0 // pred_check_branch
    %717 = sbr.rel (0) target = $region33
  $region32: #{quantize_forward.1} parent=0 // pred_region
    _
  $region33: #{quantize_forward.1} parent=0 // pred_fallthru
    _
  // Predicated region
  $region34: #{quantize_forward.1} parent=0 // pred_check
    _
  $region35: #{quantize_forward.1} parent=0 // pred_check_branch
    %719 = sbr.rel (0) target = $region37
  $region36: #{quantize_forward.1} parent=0 // pred_region
    _
  $region37: #{quantize_forward.1} parent=0 // pred_fallthru
    _
  // Predicated region
  $region38: #{quantize_forward.1} parent=0 // pred_check
    _
  $region39: #{quantize_forward.1} parent=0 // pred_check_branch
    %721 = sbr.rel (0) target = $region41
  $region40: #{quantize_forward.1} parent=0 // pred_region
    _
  $region41: #{quantize_forward.1} parent=0 // pred_fallthru
    _

</llo_original>
